<compile_context>
chip_gen: v6e
topology: v6e:2x2x1
jax: 0.10.0
libtpu: 0.0.40
codegen_flags: <defaults>
</compile_context>

<pallas_src>
import functools
import math

import jax
import jax.numpy as jnp
from jax.experimental import pallas as pl
from jax.experimental.pallas import tpu as pltpu

CURVATURE = 1.0  # PoincareBall curvature c


def _round_up(a, m):
    return (a + m - 1) // m * m


def _vmem_limit_bytes(est_bytes):
    """Generation-aware scoped-VMEM limit with headroom."""
    try:
        cap = int(pltpu.get_tpu_info().vmem_capacity_bytes)
    except Exception:  # pragma: no cover - conservative fallback (v7x physical)
        cap = 64 * 1024 * 1024
    cap = max(min(int(cap * 0.85), cap - (8 << 20)), 16 << 20)
    return int(min(cap, max(2 * est_bytes, 32 << 20)))


def _plin_fc_kernel(x_ref, *refs, c, sc, mxu_mode, n_z, fuse_norm, acc_in_out):
    """Grid (nb, nj, nk). Accumulate x@z over k; hyperbolic epilogue at k==last.

    Outputs:
      o_ref   (TB, TN)   : final logits if fuse_norm else the intermediate w
      wsq_ref (1, TB, 1) : per (row, OUT-tile) partial sum(w^2)
    """
    z_refs = refs[:n_z]
    a_ref, b_ref, zs_ref, o_ref, wsq_ref = refs[n_z:n_z + 5]
    scratch = refs[n_z + 5:]
    if acc_in_out:
        (xsq_acc,) = scratch
        s_acc = o_ref                      # f32 output block doubles as accumulator
    else:
        s_acc, xsq_acc = scratch

    k = pl.program_id(2)
    nk = pl.num_programs(2)

    @pl.when(k == 0)
    def _():
        s_acc[...] = jnp.zeros_like(s_acc)
        xsq_acc[...] = jnp.zeros_like(xsq_acc)

    x = x_ref[...].astype(jnp.float32)                     # (TB, TK)
    xsq_acc[...] += jnp.sum(x * x, axis=-1, keepdims=True)

    if mxu_mode == "f32":
        s_acc[...] += jnp.dot(x, z_refs[0][...].astype(jnp.float32),
                              preferred_element_type=jnp.float32)
    elif mxu_mode == "bf16":
        s_acc[...] += jnp.dot(x_ref[...].astype(jnp.bfloat16),
                              z_refs[0][...].astype(jnp.bfloat16),
                              preferred_element_type=jnp.float32)
    else:  # "bf16_3x": hi/lo bf16 split -> ~f32 accuracy at native MXU rate
        x_hi = x.astype(jnp.bfloat16)
        x_lo = (x - x_hi.astype(jnp.float32)).astype(jnp.bfloat16)
        z_hi = z_refs[0][...]                              # bf16, split on host
        z_lo = z_refs[1][...]
        s_acc[...] += (jnp.dot(x_hi, z_hi, preferred_element_type=jnp.float32)
                       + jnp.dot(x_lo, z_hi, preferred_element_type=jnp.float32)
                       + jnp.dot(x_hi, z_lo, preferred_element_type=jnp.float32))

    @pl.when(k == nk - 1)
    def _():
        s = s_acc[...].astype(jnp.float32)                 # raw x @ z   (TB, TN)
        xsq = xsq_acc[...]                                 # |x|^2       (TB, 1)

        # expmap0 folded into a per-row prefactor of the raw accumulator.
        xn = jnp.maximum(jnp.sqrt(xsq), 1e-15)
        t = jnp.tanh(sc * xn)
        lam = 2.0 / (1.0 - t * t)                          # conformal factor (TB,1)
        pre = (sc * lam) * (t / (sc * xn))                 # sc*lam*scale_x  (TB,1)

        a = a_ref[...]                                     # cosh(2 sc r)/||z||  (1,TN)
        b = b_ref[...]                                     # sinh(2 sc r)        (1,TN)
        zs = zs_ref[...]                                   # 2 ||z|| / sc        (1,TN)
        arg = pre * (s * a) - (lam - 1.0) * b              # (TB, TN)

        # sign-stable asinh
        aa = jnp.abs(arg)
        sgn = jnp.where(arg < 0.0, -1.0, 1.0)
        asinh = sgn * jnp.log(aa + jnp.sqrt(aa * aa + 1.0))

        v = sc * (zs * asinh)                              # sc * signed distances
        w = (0.5 / sc) * (jnp.exp(v) - jnp.exp(-v))        # sinh(v)/sc, no (TB,TN) divide
        wsq = jnp.sum(w * w, axis=-1, keepdims=True)       # this OUT tile only (TB,1)
        wsq_ref[0] = wsq

        if fuse_norm:
            # Single OUT tile -> wsq is the full-row |w|^2: finish logmap0 here.
            denom = 1.0 + jnp.sqrt(1.0 + c * wsq)
            yn = jnp.maximum(jnp.sqrt(wsq) / denom, 1e-15)
            tt = jnp.minimum(sc * yn, 1.0 - 1e-7)
            atanh = 0.5 * jnp.log((1.0 + tt) / (1.0 - tt))
            o_ref[...] = (w * (atanh / (sc * yn * denom))).astype(o_ref.dtype)
        else:
            o_ref[...] = w.astype(o_ref.dtype)


def _plin_norm_kernel(w_ref, wsq_ref, o_ref, *, c, sc):
    """Row normalization (Mobius scalar mul + logmap0) once all OUT tiles exist."""
    wsq = jnp.sum(wsq_ref[...], axis=0)                    # (TB, 1) full-row |w|^2
    denom = 1.0 + jnp.sqrt(1.0 + c * wsq)
    yn = jnp.maximum(jnp.sqrt(wsq) / denom, 1e-15)
    tt = jnp.minimum(sc * yn, 1.0 - 1e-7)
    atanh = 0.5 * jnp.log((1.0 + tt) / (1.0 - tt))
    o_ref[...] = (w_ref[...] * (atanh / (sc * yn * denom))).astype(o_ref.dtype)


def poincare_linear(x, z, bias, *, c=CURVATURE, block_b=256, block_n=1024,
                    block_k=512, mxu_mode=None):
    """Poincare FC: logmap0(poincare_fc(expmap0(x), z, bias)).

    x: (B, IN), z: (IN, OUT), bias: (OUT,) -> (B, OUT) in x.dtype.
    mxu_mode: None (auto), "bf16_3x" (hi/lo split, ~f32 accurate), "bf16", "f32".
    """
    B, IN = x.shape
    IN_z, OUT = z.shape
    assert IN_z == IN and bias.shape == (OUT,)
    c = float(c)
    sc = math.sqrt(c)
    out_dtype = x.dtype

    if mxu_mode is None:
        both_bf16 = (x.dtype == jnp.bfloat16) and (z.dtype == jnp.bfloat16)
        mxu_mode = "bf16" if both_bf16 else "bf16_3x"
    assert mxu_mode in ("bf16_3x", "bf16", "f32")

    # Lane-dense / sublane-aligned tiles.
    TB = min(_round_up(block_b, 8), _round_up(B, 8))
    B_P = _round_up(B, TB)
    TK = min(_round_up(block_k, 128), _round_up(IN, 128))
    IN_P = _round_up(IN, TK)
    TN = min(_round_up(block_n, 128), _round_up(OUT, 128))
    OUT_P = _round_up(OUT, TN)
    nb, nj, nk = B_P // TB, OUT_P // TN, IN_P // TK
    fused = nj == 1

    # Pad in the ORIGINAL dtype (no host f32 upcast -> half the DMA for bf16).
    xp = jnp.pad(x, ((0, B_P - B), (0, IN_P - IN)))
    zp = jnp.pad(z, ((0, IN_P - IN), (0, OUT_P - OUT)))
    bp = jnp.pad(bias.astype(jnp.float32), (0, OUT_P - OUT))

    # Weight-only precomputes, hoisted out of the kernel (tiny (1, OUT_P) f32).
    zf = zp.astype(jnp.float32)
    zn = jnp.maximum(jnp.sqrt(jnp.sum(zf * zf, axis=0, keepdims=True)), 1e-15)
    tcr = 2.0 * sc * bp[None, :]
    a_vec = jnp.cosh(tcr) / zn           # cosh(2 sc r) / ||z||_col
    b_vec = jnp.sinh(tcr)                # sinh(2 sc r)
    zs_vec = (2.0 / sc) * zn             # 2 ||z||_col / sc

    if mxu_mode == "bf16_3x":
        # Host-side hi/lo split of the weights (padded columns stay exactly 0).
        z_hi = zf.astype(jnp.bfloat16)
        z_lo = (zf - z_hi.astype(jnp.float32)).astype(jnp.bfloat16)
        z_args = (z_hi, z_lo)
    else:
        z_args = (zp,)
    n_z = len(z_args)

    first_out_dtype = out_dtype if fused else jnp.float32
    acc_in_out = jnp.dtype(first_out_dtype) == jnp.dtype(jnp.float32)

    x_item = jnp.dtype(x.dtype).itemsize
    z_item = sum(jnp.dtype(za.dtype).itemsize for za in z_args)
    o_item = jnp.dtype(first_out_dtype).itemsize
    est_a = int(1.25 * (2 * TB * TK * x_item + 2 * TK * TN * z_item
                        + 6 * TN * 4 + 2 * TB * TN * o_item + 2 * TB * 4
                        + (0 if acc_in_out else TB * TN * 4) + TB * 4))

    kernel_a = functools.partial(_plin_fc_kernel, c=c, sc=sc, mxu_mode=mxu_mode,
                                 n_z=n_z, fuse_norm=fused, acc_in_out=acc_in_out)

    scratch = []
    if not acc_in_out:
        scratch.append(pltpu.VMEM((TB, TN), jnp.float32))   # matmul accumulator
    scratch.append(pltpu.VMEM((TB, 1), jnp.float32))         # sum(x^2) accumulator

    w_or_out, wsq_part = pl.pallas_call(
        kernel_a,
        out_shape=(jax.ShapeDtypeStruct((B_P, OUT_P), first_out_dtype),
                   jax.ShapeDtypeStruct((nj, B_P, 1), jnp.float32)),
        grid_spec=pltpu.PrefetchScalarGridSpec(
            num_scalar_prefetch=0,
            grid=(nb, nj, nk),
            in_specs=(
                [pl.BlockSpec((TB, TK), lambda i, j, k: (i, k))]          # x
                + [pl.BlockSpec((TK, TN), lambda i, j, k: (k, j))] * n_z  # z (hi/lo)
                + [pl.BlockSpec((1, TN), lambda i, j, k: (0, j))] * 3),   # a, b, zs
            out_specs=[
                pl.BlockSpec((TB, TN), lambda i, j, k: (i, j)),
                pl.BlockSpec((1, TB, 1), lambda i, j, k: (j, i, 0)),
            ],
            scratch_shapes=scratch,
        ),
        compiler_params=pltpu.CompilerParams(
            dimension_semantics=("parallel", "parallel", "arbitrary"),
            vmem_limit_bytes=_vmem_limit_bytes(est_a)),
    )(xp, *z_args, a_vec, b_vec, zs_vec)

    if fused:
        out_p = w_or_out
    else:
        # Second, cheap elementwise pass: logmap0 couples all output columns, so
        # it runs after every OUT tile's |w|^2 partial has been produced.
        est_b = int(1.25 * (2 * TB * TN * 4 + 2 * nj * TB * 4
                            + 2 * TB * TN * jnp.dtype(out_dtype).itemsize))
        out_p = pl.pallas_call(
            functools.partial(_plin_norm_kernel, c=c, sc=sc),
            out_shape=jax.ShapeDtypeStruct((B_P, OUT_P), out_dtype),
            grid_spec=pltpu.PrefetchScalarGridSpec(
                num_scalar_prefetch=0,
                grid=(nb, nj),
                in_specs=[
                    pl.BlockSpec((TB, TN), lambda i, j: (i, j)),       # w
                    pl.BlockSpec((nj, TB, 1), lambda i, j: (0, i, 0)),  # |w|^2 partials
                ],
                out_specs=pl.BlockSpec((TB, TN), lambda i, j: (i, j)),
            ),
            compiler_params=pltpu.CompilerParams(
                dimension_semantics=("parallel", "parallel"),
                vmem_limit_bytes=_vmem_limit_bytes(est_b)),
        )(w_or_out, wsq_part)

    return out_p[:B, :OUT]


# ---- pure-JAX reference (HNN++ formulas) for validation ----
def poincare_linear_ref(x, z, bias, c=CURVATURE):
    x = x.astype(jnp.float32)
    z = z.astype(jnp.float32)
    bias = bias.astype(jnp.float32)
    sc = jnp.sqrt(jnp.float32(c))
    hp = jax.lax.Precision.HIGHEST
    xn = jnp.maximum(jnp.linalg.norm(x, axis=-1, keepdims=True), 1e-15)
    xe = jnp.tanh(sc * xn) * x / (sc * xn)
    lam = 2.0 / (1.0 - c * jnp.sum(xe * xe, axis=-1, keepdims=True))
    zn = jnp.maximum(jnp.linalg.norm(z, axis=0, keepdims=True), 1e-15)
    xz = jnp.dot(xe, z, precision=hp)
    tcr = 2.0 * sc * bias[None, :]
    d = (2.0 * zn / sc) * jnp.arcsinh(
        sc * lam / zn * xz * jnp.cosh(tcr) - (lam - 1.0) * jnp.sinh(tcr))
    w = jnp.sinh(sc * d) / sc
    y = w / (1.0 + jnp.sqrt(1.0 + c * jnp.sum(w * w, axis=-1, keepdims=True)))
    yn = jnp.maximum(jnp.linalg.norm(y, axis=-1, keepdims=True), 1e-15)
    return jnp.arctanh(sc * yn) * y / (sc * yn)


if __name__ == "__main__":
    key = jax.random.PRNGKey(0)
    k1, k2, k3, k4, k5, k6 = jax.random.split(key, 6)

    # Case 1: module defaults (id_init=True): z = 0.5*eye, bias = 0.
    B1, IN1, OUT1 = 8, 32, 32
    x1 = 0.1 * jax.random.normal(k1, (B1, IN1), dtype=jnp.float32)
    z1 = 0.5 * jnp.eye(IN1, OUT1, dtype=jnp.float32)
    b1 = jnp.zeros((OUT1,), dtype=jnp.float32)
    out1 = jax.block_until_ready(poincare_linear(x1, z1, b1))
    ref1 = poincare_linear_ref(x1, z1, b1)
    assert out1.shape == (B1, OUT1)
    assert jnp.allclose(out1, ref1, atol=2e-5, rtol=2e-4), "case 1 mismatch vs reference"

    # Case 2: non-aligned shapes + random weights/bias: batch tiling + K accumulation
    # (pl.when init/finalize) in the fused single-OUT-tile path.
    B2, IN2, OUT2 = 260, 160, 96
    x2 = 0.1 * jax.random.normal(k2, (B2, IN2), dtype=jnp.float32)
    z2 = (2 * IN2 * OUT2) ** (-0.5) * jax.random.normal(k3, (IN2, OUT2), dtype=jnp.float32)
    b2 = 0.1 * jax.random.normal(k4, (OUT2,), dtype=jnp.float32)
    out2 = jax.block_until_ready(poincare_linear(x2, z2, b2, block_b=128, block_k=128))
    ref2 = poincare_linear_ref(x2, z2, b2)
    assert out2.shape == (B2, OUT2)
    assert jnp.allclose(out2, ref2, atol=2e-5, rtol=2e-4), "case 2 mismatch vs reference"

    # Case 3: forced OUT tiling -> two-pass path (matmul/w kernel + row-norm kernel).
    B3, IN3, OUT3 = 64, 192, 256
    x3 = 0.1 * jax.random.normal(k5, (B3, IN3), dtype=jnp.float32)
    z3 = (2 * IN3 * OUT3) ** (-0.5) * jax.random.normal(k6, (IN3, OUT3), dtype=jnp.float32)
    b3 = 0.05 * jnp.ones((OUT3,), dtype=jnp.float32)
    out3 = jax.block_until_ready(
        poincare_linear(x3, z3, b3, block_b=32, block_n=128, block_k=128))
    ref3 = poincare_linear_ref(x3, z3, b3)
    assert out3.shape == (B3, OUT3)
    assert jnp.allclose(out3, ref3, atol=2e-5, rtol=2e-4), "case 3 mismatch vs reference"

    # Case 4: bf16 inputs -> bf16 DMA + single native-rate bf16 MXU matmul, bf16 output.
    x4 = x2[:64].astype(jnp.bfloat16)
    z4 = z2.astype(jnp.bfloat16)
    out4 = jax.block_until_ready(poincare_linear(x4, z4, b2))
    ref4 = poincare_linear_ref(x4, z4, b2)
    assert out4.dtype == jnp.bfloat16 and out4.shape == (64, OUT2)
    assert jnp.allclose(out4.astype(jnp.float32), ref4, atol=2e-3, rtol=2e-2), \
        "case 4 mismatch vs reference"

    print("KERNEL_OK")
</pallas_src>

<mosaic_0001>
module attributes {stable_mosaic.version = 11 : i64} {
  func.func @_plin_fc_kernel(%arg0: i32, %arg1: i32, %arg2: i32, %arg3: memref<8x128xf32, #tpu.memory_space<vmem>>, %arg4: memref<128x128xbf16, #tpu.memory_space<vmem>>, %arg5: memref<128x128xbf16, #tpu.memory_space<vmem>>, %arg6: memref<1x128xf32, #tpu.memory_space<vmem>>, %arg7: memref<1x128xf32, #tpu.memory_space<vmem>>, %arg8: memref<1x128xf32, #tpu.memory_space<vmem>>, %arg9: memref<8x128xf32, #tpu.memory_space<vmem>>, %arg10: memref<1x8x1xf32, #tpu.memory_space<vmem>>, %arg11: memref<8x1xf32, #tpu.memory_space<vmem>>) attributes {dimension_semantics = [#tpu.dimension_semantics<parallel>, #tpu.dimension_semantics<parallel>, #tpu.dimension_semantics<arbitrary>], iteration_bounds = array<i64: 1, 1, 1>, scalar_prefetch = 0 : i64, scratch_operands = 1 : i64, tpu.core_type = #tpu.core_type<tc>, window_params = [{transform_indices = @transform_0, window_bounds = array<i64: 8, 128>}, {transform_indices = @transform_1, window_bounds = array<i64: 128, 128>}, {transform_indices = @transform_2, window_bounds = array<i64: 128, 128>}, {transform_indices = @transform_3, window_bounds = array<i64: 1, 128>}, {transform_indices = @transform_4, window_bounds = array<i64: 1, 128>}, {transform_indices = @transform_5, window_bounds = array<i64: 1, 128>}, {transform_indices = @transform_6, window_bounds = array<i64: 8, 128>}, {transform_indices = @transform_7, window_bounds = array<i64: 1, 8, 1>}]} {
    %c0_i32 = arith.constant 0 : i32
    %0 = arith.cmpi eq, %arg2, %c0_i32 : i32
    %1 = arith.extui %0 : i1 to i32
    %c0_i32_0 = arith.constant 0 : i32
    %2 = arith.cmpi ne, %1, %c0_i32_0 : i32
    scf.if %2 {
      %cst_19 = arith.constant 0.000000e+00 : f32
      %27 = vector.broadcast %cst_19 : f32 to vector<8x128xf32>
      %c0_20 = arith.constant 0 : index
      %c0_21 = arith.constant 0 : index
      %28 = vector.load %arg9[%c0_20, %c0_21] : memref<8x128xf32, #tpu.memory_space<vmem>>, vector<8x128xf32>
      tpu.vector_store %arg9[%c0_20, %c0_21], %27 {strides = array<i32>} : memref<8x128xf32, #tpu.memory_space<vmem>>, vector<8x128xf32>,
      %cst_22 = arith.constant 0.000000e+00 : f32
      %29 = vector.broadcast %cst_22 : f32 to vector<8x1xf32>
      %c0_23 = arith.constant 0 : index
      %c0_24 = arith.constant 0 : index
      %30 = vector.load %arg11[%c0_23, %c0_24] : memref<8x1xf32, #tpu.memory_space<vmem>>, vector<8x1xf32>
      tpu.vector_store %arg11[%c0_23, %c0_24], %29 {strides = array<i32>} : memref<8x1xf32, #tpu.memory_space<vmem>>, vector<8x1xf32>,
    } else {
    }
    %c0 = arith.constant 0 : index
    %c0_1 = arith.constant 0 : index
    %3 = vector.load %arg3[%c0, %c0_1] : memref<8x128xf32, #tpu.memory_space<vmem>>, vector<8x128xf32>
    %c0_2 = arith.constant 0 : index
    %c0_3 = arith.constant 0 : index
    %4 = vector.load %arg11[%c0_2, %c0_3] : memref<8x1xf32, #tpu.memory_space<vmem>>, vector<8x1xf32>
    %5 = arith.mulf %3, %3 : vector<8x128xf32>
    %cst = arith.constant dense<0.000000e+00> : vector<8xf32>
    %6 = vector.multi_reduction <add>, %5, %cst [1] : vector<8x128xf32> to vector<8xf32>
    %7 = vector.shape_cast %6 : vector<8xf32> to vector<8x1xf32>
    %8 = arith.addf %4, %7 : vector<8x1xf32>
    %c0_4 = arith.constant 0 : index
    %c0_5 = arith.constant 0 : index
    %9 = vector.load %arg11[%c0_4, %c0_5] : memref<8x1xf32, #tpu.memory_space<vmem>>, vector<8x1xf32>
    tpu.vector_store %arg11[%c0_4, %c0_5], %8 {strides = array<i32>} : memref<8x1xf32, #tpu.memory_space<vmem>>, vector<8x1xf32>,
    %10 = arith.truncf %3 : vector<8x128xf32> to vector<8x128xbf16>
    %11 = arith.extf %10 : vector<8x128xbf16> to vector<8x128xf32>
    %12 = arith.subf %3, %11 : vector<8x128xf32>
    %13 = arith.truncf %12 : vector<8x128xf32> to vector<8x128xbf16>
    %c0_6 = arith.constant 0 : index
    %c0_7 = arith.constant 0 : index
    %14 = vector.load %arg4[%c0_6, %c0_7] : memref<128x128xbf16, #tpu.memory_space<vmem>>, vector<128x128xbf16>
    %c0_8 = arith.constant 0 : index
    %c0_9 = arith.constant 0 : index
    %15 = vector.load %arg5[%c0_8, %c0_9] : memref<128x128xbf16, #tpu.memory_space<vmem>>, vector<128x128xbf16>
    %c0_10 = arith.constant 0 : index
    %c0_11 = arith.constant 0 : index
    %16 = vector.load %arg9[%c0_10, %c0_11] : memref<8x128xf32, #tpu.memory_space<vmem>>, vector<8x128xf32>
    %cst_12 = arith.constant dense<0.000000e+00> : vector<8x128xf32>
    %17 = tpu.matmul %10, %14, %cst_12 {dimension_numbers = #tpu.dot_dimension_numbers<[1], [0], [0], [1], [0, 0, 1, 1], [], []>} : vector<8x128xbf16>, vector<128x128xbf16>, vector<8x128xf32> -> vector<8x128xf32>
    %cst_13 = arith.constant dense<0.000000e+00> : vector<8x128xf32>
    %18 = tpu.matmul %13, %14, %cst_13 {dimension_numbers = #tpu.dot_dimension_numbers<[1], [0], [0], [1], [0, 0, 1, 1], [], []>} : vector<8x128xbf16>, vector<128x128xbf16>, vector<8x128xf32> -> vector<8x128xf32>
    %19 = arith.addf %17, %18 : vector<8x128xf32>
    %cst_14 = arith.constant dense<0.000000e+00> : vector<8x128xf32>
    %20 = tpu.matmul %10, %15, %cst_14 {dimension_numbers = #tpu.dot_dimension_numbers<[1], [0], [0], [1], [0, 0, 1, 1], [], []>} : vector<8x128xbf16>, vector<128x128xbf16>, vector<8x128xf32> -> vector<8x128xf32>
    %21 = arith.addf %19, %20 : vector<8x128xf32>
    %22 = arith.addf %16, %21 : vector<8x128xf32>
    %c0_15 = arith.constant 0 : index
    %c0_16 = arith.constant 0 : index
    %23 = vector.load %arg9[%c0_15, %c0_16] : memref<8x128xf32, #tpu.memory_space<vmem>>, vector<8x128xf32>
    tpu.vector_store %arg9[%c0_15, %c0_16], %22 {strides = array<i32>} : memref<8x128xf32, #tpu.memory_space<vmem>>, vector<8x128xf32>,
    %c0_i32_17 = arith.constant 0 : i32
    %24 = arith.cmpi eq, %arg2, %c0_i32_17 : i32
    %25 = arith.extui %24 : i1 to i32
    %c0_i32_18 = arith.constant 0 : i32
    %26 = arith.cmpi ne, %25, %c0_i32_18 : i32
    scf.if %26 {
      %c0_19 = arith.constant 0 : index
      %c0_20 = arith.constant 0 : index
      %27 = vector.load %arg9[%c0_19, %c0_20] : memref<8x128xf32, #tpu.memory_space<vmem>>, vector<8x128xf32>
      %c0_21 = arith.constant 0 : index
      %c0_22 = arith.constant 0 : index
      %28 = vector.load %arg11[%c0_21, %c0_22] : memref<8x1xf32, #tpu.memory_space<vmem>>, vector<8x1xf32>
      %29 = math.sqrt %28 : vector<8x1xf32>
      %cst_23 = arith.constant 1.000000e-15 : f32
      %30 = vector.broadcast %cst_23 : f32 to vector<8x1xf32>
      %31 = arith.maximumf %29, %30 : vector<8x1xf32>
      %cst_24 = arith.constant 1.000000e+00 : f32
      %32 = vector.broadcast %cst_24 : f32 to vector<8x1xf32>
      %33 = arith.mulf %32, %31 : vector<8x1xf32>
      %34 = math.tanh %33 : vector<8x1xf32>
      %35 = arith.mulf %34, %34 : vector<8x1xf32>
      %cst_25 = arith.constant 1.000000e+00 : f32
      %36 = vector.broadcast %cst_25 : f32 to vector<8x1xf32>
      %37 = arith.subf %36, %35 : vector<8x1xf32>
      %cst_26 = arith.constant 2.000000e+00 : f32
      %38 = vector.broadcast %cst_26 : f32 to vector<8x1xf32>
      %39 = arith.divf %38, %37 : vector<8x1xf32>
      %cst_27 = arith.constant 1.000000e+00 : f32
      %40 = vector.broadcast %cst_27 : f32 to vector<8x1xf32>
      %41 = arith.mulf %40, %39 : vector<8x1xf32>
      %cst_28 = arith.constant 1.000000e+00 : f32
      %42 = vector.broadcast %cst_28 : f32 to vector<8x1xf32>
      %43 = arith.mulf %42, %31 : vector<8x1xf32>
      %44 = arith.divf %34, %43 : vector<8x1xf32>
      %45 = arith.mulf %41, %44 : vector<8x1xf32>
      %c0_29 = arith.constant 0 : index
      %c0_30 = arith.constant 0 : index
      %46 = vector.load %arg6[%c0_29, %c0_30] : memref<1x128xf32, #tpu.memory_space<vmem>>, vector<1x128xf32>
      %c0_31 = arith.constant 0 : index
      %c0_32 = arith.constant 0 : index
      %47 = vector.load %arg7[%c0_31, %c0_32] : memref<1x128xf32, #tpu.memory_space<vmem>>, vector<1x128xf32>
      %c0_33 = arith.constant 0 : index
      %c0_34 = arith.constant 0 : index
      %48 = vector.load %arg8[%c0_33, %c0_34] : memref<1x128xf32, #tpu.memory_space<vmem>>, vector<1x128xf32>
      %49 = vector.broadcast %46 : vector<1x128xf32> to vector<8x128xf32>
      %50 = arith.mulf %27, %49 : vector<8x128xf32>
      %51 = vector.broadcast %45 : vector<8x1xf32> to vector<8x128xf32>
      %52 = arith.mulf %51, %50 : vector<8x128xf32>
      %cst_35 = arith.constant 1.000000e+00 : f32
      %53 = vector.broadcast %cst_35 : f32 to vector<8x1xf32>
      %54 = arith.subf %39, %53 : vector<8x1xf32>
      %55 = vector.broadcast %54 : vector<8x1xf32> to vector<8x128xf32>
      %56 = vector.broadcast %47 : vector<1x128xf32> to vector<8x128xf32>
      %57 = arith.mulf %55, %56 : vector<8x128xf32>
      %58 = arith.subf %52, %57 : vector<8x128xf32>
      %59 = math.absf %58 : vector<8x128xf32>
      %cst_36 = arith.constant 0.000000e+00 : f32
      %60 = vector.broadcast %cst_36 : f32 to vector<8x128xf32>
      %61 = arith.cmpf olt, %58, %60 : vector<8x128xf32>
      %cst_37 = arith.constant -1.000000e+00 : f32
      %cst_38 = arith.constant 1.000000e+00 : f32
      %62 = vector.broadcast %cst_37 : f32 to vector<8x128xf32>
      %63 = vector.broadcast %cst_38 : f32 to vector<8x128xf32>
      %64 = arith.select %61, %62, %63 : vector<8x128xi1>, vector<8x128xf32>
      %65 = arith.mulf %59, %59 : vector<8x128xf32>
      %cst_39 = arith.constant 1.000000e+00 : f32
      %66 = vector.broadcast %cst_39 : f32 to vector<8x128xf32>
      %67 = arith.addf %65, %66 : vector<8x128xf32>
      %68 = math.sqrt %67 : vector<8x128xf32>
      %69 = arith.addf %59, %68 : vector<8x128xf32>
      %70 = math.log %69 : vector<8x128xf32>
      %71 = arith.mulf %64, %70 : vector<8x128xf32>
      %72 = vector.broadcast %48 : vector<1x128xf32> to vector<8x128xf32>
      %73 = arith.mulf %72, %71 : vector<8x128xf32>
      %cst_40 = arith.constant 1.000000e+00 : f32
      %74 = vector.broadcast %cst_40 : f32 to vector<8x128xf32>
      %75 = arith.mulf %74, %73 : vector<8x128xf32>
      %76 = math.exp %75 : vector<8x128xf32>
      %cst_41 = arith.constant 0.000000e+00 : f32
      %77 = vector.broadcast %cst_41 : f32 to vector<8x128xf32>
      %78 = arith.subf %77, %75 : vector<8x128xf32>
      %79 = math.exp %78 : vector<8x128xf32>
      %80 = arith.subf %76, %79 : vector<8x128xf32>
      %cst_42 = arith.constant 5.000000e-01 : f32
      %81 = vector.broadcast %cst_42 : f32 to vector<8x128xf32>
      %82 = arith.mulf %81, %80 : vector<8x128xf32>
      %83 = arith.mulf %82, %82 : vector<8x128xf32>
      %cst_43 = arith.constant dense<0.000000e+00> : vector<8xf32>
      %84 = vector.multi_reduction <add>, %83, %cst_43 [1] : vector<8x128xf32> to vector<8xf32>
      %85 = vector.shape_cast %84 : vector<8xf32> to vector<8x1xf32>
      %c0_44 = arith.constant 0 : index
      %c0_45 = arith.constant 0 : index
      %c0_46 = arith.constant 0 : index
      %86 = vector.load %arg10[%c0_44, %c0_45, %c0_46] : memref<1x8x1xf32, #tpu.memory_space<vmem>>, vector<1x8x1xf32>
      %87 = vector.shape_cast %86 : vector<1x8x1xf32> to vector<8x1xf32>
      %88 = vector.shape_cast %85 : vector<8x1xf32> to vector<1x8x1xf32>
      tpu.vector_store %arg10[%c0_44, %c0_45, %c0_46], %88 {strides = array<i32>} : memref<1x8x1xf32, #tpu.memory_space<vmem>>, vector<1x8x1xf32>,
      %cst_47 = arith.constant 1.000000e+00 : f32
      %89 = vector.broadcast %cst_47 : f32 to vector<8x1xf32>
      %90 = arith.mulf %89, %85 : vector<8x1xf32>
      %cst_48 = arith.constant 1.000000e+00 : f32
      %91 = vector.broadcast %cst_48 : f32 to vector<8x1xf32>
      %92 = arith.addf %91, %90 : vector<8x1xf32>
      %93 = math.sqrt %92 : vector<8x1xf32>
      %cst_49 = arith.constant 1.000000e+00 : f32
      %94 = vector.broadcast %cst_49 : f32 to vector<8x1xf32>
      %95 = arith.addf %94, %93 : vector<8x1xf32>
      %96 = math.sqrt %85 : vector<8x1xf32>
      %97 = arith.divf %96, %95 : vector<8x1xf32>
      %cst_50 = arith.constant 1.000000e-15 : f32
      %98 = vector.broadcast %cst_50 : f32 to vector<8x1xf32>
      %99 = arith.maximumf %97, %98 : vector<8x1xf32>
      %cst_51 = arith.constant 1.000000e+00 : f32
      %100 = vector.broadcast %cst_51 : f32 to vector<8x1xf32>
      %101 = arith.mulf %100, %99 : vector<8x1xf32>
      %cst_52 = arith.constant 0.99999988 : f32
      %102 = vector.broadcast %cst_52 : f32 to vector<8x1xf32>
      %103 = arith.minimumf %101, %102 : vector<8x1xf32>
      %cst_53 = arith.constant 1.000000e+00 : f32
      %104 = vector.broadcast %cst_53 : f32 to vector<8x1xf32>
      %105 = arith.addf %104, %103 : vector<8x1xf32>
      %cst_54 = arith.constant 1.000000e+00 : f32
      %106 = vector.broadcast %cst_54 : f32 to vector<8x1xf32>
      %107 = arith.subf %106, %103 : vector<8x1xf32>
      %108 = arith.divf %105, %107 : vector<8x1xf32>
      %109 = math.log %108 : vector<8x1xf32>
      %cst_55 = arith.constant 5.000000e-01 : f32
      %110 = vector.broadcast %cst_55 : f32 to vector<8x1xf32>
      %111 = arith.mulf %110, %109 : vector<8x1xf32>
      %cst_56 = arith.constant 1.000000e+00 : f32
      %112 = vector.broadcast %cst_56 : f32 to vector<8x1xf32>
      %113 = arith.mulf %112, %99 : vector<8x1xf32>
      %114 = arith.mulf %113, %95 : vector<8x1xf32>
      %115 = arith.divf %111, %114 : vector<8x1xf32>
      %116 = vector.broadcast %115 : vector<8x1xf32> to vector<8x128xf32>
      %117 = arith.mulf %82, %116 : vector<8x128xf32>
      %c0_57 = arith.constant 0 : index
      %c0_58 = arith.constant 0 : index
      %118 = vector.load %arg9[%c0_57, %c0_58] : memref<8x128xf32, #tpu.memory_space<vmem>>, vector<8x128xf32>
      tpu.vector_store %arg9[%c0_57, %c0_58], %117 {strides = array<i32>} : memref<8x128xf32, #tpu.memory_space<vmem>>, vector<8x128xf32>,
    } else {
    }
    return
  }
  func.func @transform_0(%arg0: i32, %arg1: i32, %arg2: i32) -> (i32, i32) {
    %c0_i32 = arith.constant 0 : i32
    return %arg0, %arg2 : i32, i32
  }
  func.func @transform_1(%arg0: i32, %arg1: i32, %arg2: i32) -> (i32, i32) {
    %c0_i32 = arith.constant 0 : i32
    return %arg2, %arg1 : i32, i32
  }
  func.func @transform_2(%arg0: i32, %arg1: i32, %arg2: i32) -> (i32, i32) {
    %c0_i32 = arith.constant 0 : i32
    return %arg2, %arg1 : i32, i32
  }
  func.func @transform_3(%arg0: i32, %arg1: i32, %arg2: i32) -> (i32, i32) {
    %c0_i32 = arith.constant 0 : i32
    %c0_i32_0 = arith.constant 0 : i32
    return %c0_i32, %arg1 : i32, i32
  }
  func.func @transform_4(%arg0: i32, %arg1: i32, %arg2: i32) -> (i32, i32) {
    %c0_i32 = arith.constant 0 : i32
    %c0_i32_0 = arith.constant 0 : i32
    return %c0_i32, %arg1 : i32, i32
  }
  func.func @transform_5(%arg0: i32, %arg1: i32, %arg2: i32) -> (i32, i32) {
    %c0_i32 = arith.constant 0 : i32
    %c0_i32_0 = arith.constant 0 : i32
    return %c0_i32, %arg1 : i32, i32
  }
  func.func @transform_6(%arg0: i32, %arg1: i32, %arg2: i32) -> (i32, i32) {
    %c0_i32 = arith.constant 0 : i32
    return %arg0, %arg1 : i32, i32
  }
  func.func @transform_7(%arg0: i32, %arg1: i32, %arg2: i32) -> (i32, i32, i32) {
    %c0_i32 = arith.constant 0 : i32
    %c0_i32_0 = arith.constant 0 : i32
    return %arg1, %arg0, %c0_i32 : i32, i32, i32
  }
}

</mosaic_0001>

<llo_original>
// kernel: tpu_custom_call.1
$region0: #{tpu_custom_call.1}
  #allocation0 [shape = 'u32[]', space=smem, size = 0x4, offset = 0x4, fixed_abs, tag = 'smem constant byte address 0x4 - core index']
  #allocation1 [shape = 'u32[144,128]{1,0:T(1,128)}', space=vmem, size = 0x12000, scoped, tag = 'internal scratch']
  #allocation2 [shape = 'f32[8,1]{1,0:T(8,128)}', space=vmem, size = 0x1000, scoped, tag = 'scratch operand']
  %s0 = inlined_call_operand.hbm [shape: f32[8,128], index: 0, kind: input, shape index: {}]
  %s1 = inlined_call_operand.hbm [shape: bf16[128,128], index: 1, kind: input, shape index: {}]
  %s2 = inlined_call_operand.hbm [shape: bf16[128,128], index: 2, kind: input, shape index: {}]
  %s3 = inlined_call_operand.vmem [shape: f32[1,128], index: 3, kind: input, shape index: {}]
  %s4 = inlined_call_operand.vmem [shape: f32[1,128], index: 4, kind: input, shape index: {}]
  %s5 = inlined_call_operand.vmem [shape: f32[1,128], index: 5, kind: input, shape index: {}]
  %s6 = inlined_call_operand.hbm [shape: f32[8,128], index: 6, kind: output, shape index: {0}]
  %s7 = inlined_call_operand.vmem [shape: f32[1,8,1], index: 7, kind: output, shape index: {1}]
  %8 = xla_tuple %s6, %s7
  %s9 = sld [smem:[#allocation0]]
  $region62: #{tpu_custom_call.1} parent=0
    _
  %s11 = ssub.s32 1, %s9
  %s12 = scalar_select 0, %s11, %s9
  $region1: #{tpu_custom_call.1} parent=0
    #allocation3 [shape = 'u8[4096]{0}', space=vmem, size = 0x1000, scoped, tag = 'input window, operand 0, single buffered']
    #allocation4 [shape = 's32[1]{0}', space=sflag, size = 0x4, scoped, tag = 'scoped memory for tpu_custom_call.1']
    #allocation5 [shape = 's32[1]{0}', space=sflag, size = 0x4, scoped, tag = 'scoped memory for tpu_custom_call.1']
    #allocation6 [shape = 'u8[32768]{0}', space=vmem, size = 0x8000, scoped, tag = 'input window, operand 1, single buffered']
    #allocation7 [shape = 's32[1]{0}', space=sflag, size = 0x4, scoped, tag = 'scoped memory for tpu_custom_call.1']
    #allocation8 [shape = 'u8[32768]{0}', space=vmem, size = 0x8000, scoped, tag = 'input window, operand 2, single buffered']
    #allocation9 [shape = 'u8[4096]{0}', space=vmem, size = 0x1000, scoped, tag = 'output window, operand 0, single buffered']
    %13 = vsyncpa [#allocation4], 0
    %14 = vsyncpa [#allocation7], 0
    %15 = vsyncpa [#allocation5], 0
    // Predicated region
    $region2: #{tpu_custom_call.1} parent=1 // pred_check
      _
    $region3: #{tpu_custom_call.1} parent=1 // pred_check_branch
      %17 = sbr.rel (0) target = $region5
    $region4: #{tpu_custom_call.1} parent=1 // pred_region
      %s19 = ssub.s32 128, 128
      %20 = vsyncadd [#allocation4], %s19
      %s22 = sshll.u32 [#allocation3], 4
      %s23 = int_to_ptr.vmem [resolvable:$true] %s22
      %25 = dma.hbm_to_vmem [thread:$0]  %s0, 128, %s23, [#allocation4]
    $region5: #{tpu_custom_call.1} parent=1 // pred_fallthru
      _
    // Predicated region
    $region6: #{tpu_custom_call.1} parent=1 // pred_check
      _
    $region7: #{tpu_custom_call.1} parent=1 // pred_check_branch
      %27 = sbr.rel (0) target = $region9
    $region8: #{tpu_custom_call.1} parent=1 // pred_region
      %s29 = ssub.s32 1024, 1024
      %30 = vsyncadd [#allocation7], %s29
      %s31 = sshll.u32 [#allocation6], 4
      %s32 = int_to_ptr.vmem [resolvable:$true] %s31
      %37 = dma.hbm_to_vmem [thread:$0]  %s1, 1024, %s32, [#allocation7], 64, 64, 4
    $region9: #{tpu_custom_call.1} parent=1 // pred_fallthru
      _
    // Predicated region
    $region10: #{tpu_custom_call.1} parent=1 // pred_check
      _
    $region11: #{tpu_custom_call.1} parent=1 // pred_check_branch
      %39 = sbr.rel (0) target = $region13
    $region12: #{tpu_custom_call.1} parent=1 // pred_region
      %s41 = ssub.s32 1024, 1024
      %42 = vsyncadd [#allocation7], %s41
      %s43 = sshll.u32 [#allocation8], 4
      %s44 = int_to_ptr.vmem [resolvable:$true] %s43
      %49 = dma.hbm_to_vmem [thread:$0]  %s2, 1024, %s44, [#allocation7], 64, 64, 4
    $region13: #{tpu_custom_call.1} parent=1 // pred_fallthru
      _
    // Predicated region
    $region14: #{tpu_custom_call.1} parent=1 // pred_check
      _
    $region15: #{tpu_custom_call.1} parent=1 // pred_check_branch
      %51 = sbr.rel (0) target = $region17
    $region16: #{tpu_custom_call.1} parent=1 // pred_region
      _
    $region17: #{tpu_custom_call.1} parent=1 // pred_fallthru
      _
    // Predicated region
    $region18: #{tpu_custom_call.1} parent=1 // pred_check
      _
    $region19: #{tpu_custom_call.1} parent=1 // pred_check_branch
      %53 = sbr.rel (0) target = $region21
    $region20: #{tpu_custom_call.1} parent=1 // pred_region
      _
    $region21: #{tpu_custom_call.1} parent=1 // pred_fallthru
      _
    // Predicated region
    $region22: #{tpu_custom_call.1} parent=1 // pred_check
      _
    $region23: #{tpu_custom_call.1} parent=1 // pred_check_branch
      %55 = sbr.rel (0) target = $region25
    $region24: #{tpu_custom_call.1} parent=1 // pred_region
      _
    $region25: #{tpu_custom_call.1} parent=1 // pred_fallthru
      _
    // Predicated region
    $region26: #{tpu_custom_call.1} parent=1 // pred_check
      _
    $region27: #{tpu_custom_call.1} parent=1 // pred_check_branch
      %57 = sbr.rel (0) target = $region29
    $region28: #{tpu_custom_call.1} parent=1 // pred_region
      %58 = dma.done [#allocation4], 128
    $region29: #{tpu_custom_call.1} parent=1 // pred_fallthru
      _
    // Predicated region
    $region30: #{tpu_custom_call.1} parent=1 // pred_check
      _
    $region31: #{tpu_custom_call.1} parent=1 // pred_check_branch
      %60 = sbr.rel (0) target = $region33
    $region32: #{tpu_custom_call.1} parent=1 // pred_region
      %61 = dma.done [#allocation7], 1024
    $region33: #{tpu_custom_call.1} parent=1 // pred_fallthru
      _
    // Predicated region
    $region34: #{tpu_custom_call.1} parent=1 // pred_check
      _
    $region35: #{tpu_custom_call.1} parent=1 // pred_check_branch
      %63 = sbr.rel (0) target = $region37
    $region36: #{tpu_custom_call.1} parent=1 // pred_region
      %64 = dma.done [#allocation7], 1024
    $region37: #{tpu_custom_call.1} parent=1 // pred_fallthru
      _
    %p66 = scmp.eq.s32.totalorder 0, 0
    // Predicated region
    $region38: #{tpu_custom_call.1} parent=1 // pred_check
      %p67 = pneg %p66
    $region39: #{tpu_custom_call.1} parent=1 // pred_check_branch
      %69 = sbr.rel (%p67) target = $region41
    $region40: #{tpu_custom_call.1} parent=1 // pred_region
      %70 = vst [vmem:[#allocation9] sm:$0xff] 0.0
      %vm71 = vcmask 7168
      %72 = vst.msk [vmem:[#allocation2] sm:$0xff] %vm71, 0.0
    $region41: #{tpu_custom_call.1} parent=1 // pred_fallthru
      _
    %v73 = vld [vmem:[#allocation3] sm:$0xff]
    %v74 = vld [vmem:[#allocation2] sm:$0xff]
    %v75 = vmul.f32 %v73, %v73
    %76 = vadd.xlane.f32.xlu0 %v75
    %v77 = vpop.xlane.xlu0 %76
    %v78 = vadd.f32 %v74, %v77
    %vm79 = vcmask 7168
    %80 = vst.msk [vmem:[#allocation2] sm:$0xff] %vm79, %v78
    %v81 = vpack.c.bf16 %v73, %v73
    %v82 = vunpack.c.l.bf16 %v81
    %v83 = vsub.f32 %v73, %v82
    %v84 = vpack.c.bf16 %v83, %v83
    %v85 = vld [vmem:[#allocation6] sm:$0xf]
    %v86 = vld [vmem:[#allocation6 + $0x4] sm:$0xf]
    %v87 = vld [vmem:[#allocation6 + $0x8] sm:$0xf]
    %v88 = vld [vmem:[#allocation6 + $0xc] sm:$0xf]
    %v89 = vld [vmem:[#allocation6 + $0x10] sm:$0xf]
    %v90 = vld [vmem:[#allocation6 + $0x14] sm:$0xf]
    %v91 = vld [vmem:[#allocation6 + $0x18] sm:$0xf]
    %v92 = vld [vmem:[#allocation6 + $0x1c] sm:$0xf]
    %v93 = vld [vmem:[#allocation6 + $0x20] sm:$0xf]
    %v94 = vld [vmem:[#allocation6 + $0x24] sm:$0xf]
    %v95 = vld [vmem:[#allocation6 + $0x28] sm:$0xf]
    %v96 = vld [vmem:[#allocation6 + $0x2c] sm:$0xf]
    %v97 = vld [vmem:[#allocation6 + $0x30] sm:$0xf]
    %v98 = vld [vmem:[#allocation6 + $0x34] sm:$0xf]
    %v99 = vld [vmem:[#allocation6 + $0x38] sm:$0xf]
    %v100 = vld [vmem:[#allocation6 + $0x3c] sm:$0xf]
    %v101 = vld [vmem:[#allocation8] sm:$0xf]
    %v102 = vld [vmem:[#allocation8 + $0x4] sm:$0xf]
    %v103 = vld [vmem:[#allocation8 + $0x8] sm:$0xf]
    %v104 = vld [vmem:[#allocation8 + $0xc] sm:$0xf]
    %v105 = vld [vmem:[#allocation8 + $0x10] sm:$0xf]
    %v106 = vld [vmem:[#allocation8 + $0x14] sm:$0xf]
    %v107 = vld [vmem:[#allocation8 + $0x18] sm:$0xf]
    %v108 = vld [vmem:[#allocation8 + $0x1c] sm:$0xf]
    %v109 = vld [vmem:[#allocation8 + $0x20] sm:$0xf]
    %v110 = vld [vmem:[#allocation8 + $0x24] sm:$0xf]
    %v111 = vld [vmem:[#allocation8 + $0x28] sm:$0xf]
    %v112 = vld [vmem:[#allocation8 + $0x2c] sm:$0xf]
    %v113 = vld [vmem:[#allocation8 + $0x30] sm:$0xf]
    %v114 = vld [vmem:[#allocation8 + $0x34] sm:$0xf]
    %v115 = vld [vmem:[#allocation8 + $0x38] sm:$0xf]
    %v116 = vld [vmem:[#allocation8 + $0x3c] sm:$0xf]
    %v117 = vld [vmem:[#allocation9] sm:$0xff]
    %v134 = vunpack.c.l.b16 %v85
    %v135 = vunpack.c.l.b16 %v86
    %v136 = vunpack.c.l.b16 %v87
    %v137 = vunpack.c.l.b16 %v88
    %v138 = vunpack.c.l.b16 %v89
    %v139 = vunpack.c.l.b16 %v90
    %v140 = vunpack.c.l.b16 %v91
    %v141 = vunpack.c.l.b16 %v92
    %v142 = vunpack.c.l.b16 %v93
    %v143 = vunpack.c.l.b16 %v94
    %v144 = vunpack.c.l.b16 %v95
    %v145 = vunpack.c.l.b16 %v96
    %v146 = vunpack.c.l.b16 %v97
    %v147 = vunpack.c.l.b16 %v98
    %v148 = vunpack.c.l.b16 %v99
    %v149 = vunpack.c.l.b16 %v100
    %v150 = vpack.c.b16 %v135, %v134
    %v151 = vpack.c.b16 %v137, %v136
    %v152 = vpack.c.b16 %v139, %v138
    %v153 = vpack.c.b16 %v141, %v140
    %v154 = vpack.c.b16 %v143, %v142
    %v155 = vpack.c.b16 %v145, %v144
    %v156 = vpack.c.b16 %v147, %v146
    %v157 = vpack.c.b16 %v149, %v148
    %166 = vmatprep.subr.bf16.mxu0 0
    %167 = vmatpush1.bf16.msra.mxu0 %v157
    %168 = vmatprep.subr.bf16.mxu0 0
    %169 = vmatpush1.bf16.msra.mxu0 %v156
    %170 = vmatprep.subr.bf16.mxu0 0
    %171 = vmatpush1.bf16.msra.mxu0 %v155
    %172 = vmatprep.subr.bf16.mxu0 0
    %173 = vmatpush1.bf16.msra.mxu0 %v154
    %174 = vmatprep.subr.bf16.mxu0 0
    %175 = vmatpush1.bf16.msra.mxu0 %v153
    %176 = vmatprep.subr.bf16.mxu0 0
    %177 = vmatpush1.bf16.msra.mxu0 %v152
    %178 = vmatprep.subr.bf16.mxu0 0
    %179 = vmatpush1.bf16.msra.mxu0 %v151
    %180 = vmatprep.subr.bf16.mxu0 0
    %181 = vmatpush1.bf16.msra.mxu0 %v150
    %182 = vmatprep.subr.bf16.mxu0 0
    %183 = vmatpush2.bf16.msra.mxu0 0
    %184 = vmatprep.subr.bf16.mxu0 0
    %185 = vmatpush2.bf16.msra.mxu0 0
    %186 = vmatprep.subr.bf16.mxu0 0
    %187 = vmatpush2.bf16.msra.mxu0 0
    %188 = vmatprep.subr.bf16.mxu0 0
    %189 = vmatpush2.bf16.msra.mxu0 0
    %190 = vmatprep.subr.bf16.mxu0 0
    %191 = vmatpush2.bf16.msra.mxu0 0
    %192 = vmatprep.subr.bf16.mxu0 0
    %193 = vmatpush2.bf16.msra.mxu0 0
    %194 = vmatprep.subr.bf16.mxu0 0
    %195 = vmatpush2.bf16.msra.mxu0 0
    %196 = vmatprep.subr.bf16.mxu0 0
    %197 = vmatpush2.bf16.msra.mxu0 0
    %198 = vmatprep.mubr.bf16.mxu0 0
    %199 = vmatmul.mubr.bf16.gmra.mxu0 %v84
    %v200 = vpop.f32.mrf.mxu0
    %v201 = vadd.f32 0.0, %v200
    %v202 = vpop.f32.mrf.mxu0
    %v203 = vpop.f32.mrf.mxu0
    %v204 = vpop.f32.mrf.mxu0
    %205 = vdwg.mxu0
    %206 = vmatprep.subr.bf16.mxu0 0
    %207 = vmatpush1.bf16.msra.mxu0 %v157
    %208 = vmatprep.subr.bf16.mxu0 0
    %209 = vmatpush1.bf16.msra.mxu0 %v156
    %210 = vmatprep.subr.bf16.mxu0 0
    %211 = vmatpush1.bf16.msra.mxu0 %v155
    %212 = vmatprep.subr.bf16.mxu0 0
    %213 = vmatpush1.bf16.msra.mxu0 %v154
    %214 = vmatprep.subr.bf16.mxu0 0
    %215 = vmatpush1.bf16.msra.mxu0 %v153
    %216 = vmatprep.subr.bf16.mxu0 0
    %217 = vmatpush1.bf16.msra.mxu0 %v152
    %218 = vmatprep.subr.bf16.mxu0 0
    %219 = vmatpush1.bf16.msra.mxu0 %v151
    %220 = vmatprep.subr.bf16.mxu0 0
    %221 = vmatpush1.bf16.msra.mxu0 %v150
    %222 = vmatprep.subr.bf16.mxu0 0
    %223 = vmatpush2.bf16.msra.mxu0 0
    %224 = vmatprep.subr.bf16.mxu0 0
    %225 = vmatpush2.bf16.msra.mxu0 0
    %226 = vmatprep.subr.bf16.mxu0 0
    %227 = vmatpush2.bf16.msra.mxu0 0
    %228 = vmatprep.subr.bf16.mxu0 0
    %229 = vmatpush2.bf16.msra.mxu0 0
    %230 = vmatprep.subr.bf16.mxu0 0
    %231 = vmatpush2.bf16.msra.mxu0 0
    %232 = vmatprep.subr.bf16.mxu0 0
    %233 = vmatpush2.bf16.msra.mxu0 0
    %234 = vmatprep.subr.bf16.mxu0 0
    %235 = vmatpush2.bf16.msra.mxu0 0
    %236 = vmatprep.subr.bf16.mxu0 0
    %237 = vmatpush2.bf16.msra.mxu0 0
    %238 = vmatprep.mubr.bf16.mxu0 0
    %239 = vmatmul.mubr.bf16.gmra.mxu0 %v81
    %v240 = vpop.f32.mrf.mxu0
    %v241 = vadd.f32 %v201, %v240
    %v242 = vpop.f32.mrf.mxu0
    %v243 = vpop.f32.mrf.mxu0
    %v244 = vpop.f32.mrf.mxu0
    %245 = vdwg.mxu0
    %v262 = vunpack.c.l.b16 %v101
    %v263 = vunpack.c.l.b16 %v102
    %v264 = vunpack.c.l.b16 %v103
    %v265 = vunpack.c.l.b16 %v104
    %v266 = vunpack.c.l.b16 %v105
    %v267 = vunpack.c.l.b16 %v106
    %v268 = vunpack.c.l.b16 %v107
    %v269 = vunpack.c.l.b16 %v108
    %v270 = vunpack.c.l.b16 %v109
    %v271 = vunpack.c.l.b16 %v110
    %v272 = vunpack.c.l.b16 %v111
    %v273 = vunpack.c.l.b16 %v112
    %v274 = vunpack.c.l.b16 %v113
    %v275 = vunpack.c.l.b16 %v114
    %v276 = vunpack.c.l.b16 %v115
    %v277 = vunpack.c.l.b16 %v116
    %v278 = vpack.c.b16 %v263, %v262
    %v279 = vpack.c.b16 %v265, %v264
    %v280 = vpack.c.b16 %v267, %v266
    %v281 = vpack.c.b16 %v269, %v268
    %v282 = vpack.c.b16 %v271, %v270
    %v283 = vpack.c.b16 %v273, %v272
    %v284 = vpack.c.b16 %v275, %v274
    %v285 = vpack.c.b16 %v277, %v276
    %294 = vmatprep.subr.bf16.mxu0 0
    %295 = vmatpush1.bf16.msra.mxu0 %v285
    %296 = vmatprep.subr.bf16.mxu0 0
    %297 = vmatpush1.bf16.msra.mxu0 %v284
    %298 = vmatprep.subr.bf16.mxu0 0
    %299 = vmatpush1.bf16.msra.mxu0 %v283
    %300 = vmatprep.subr.bf16.mxu0 0
    %301 = vmatpush1.bf16.msra.mxu0 %v282
    %302 = vmatprep.subr.bf16.mxu0 0
    %303 = vmatpush1.bf16.msra.mxu0 %v281
    %304 = vmatprep.subr.bf16.mxu0 0
    %305 = vmatpush1.bf16.msra.mxu0 %v280
    %306 = vmatprep.subr.bf16.mxu0 0
    %307 = vmatpush1.bf16.msra.mxu0 %v279
    %308 = vmatprep.subr.bf16.mxu0 0
    %309 = vmatpush1.bf16.msra.mxu0 %v278
    %310 = vmatprep.subr.bf16.mxu0 0
    %311 = vmatpush2.bf16.msra.mxu0 0
    %312 = vmatprep.subr.bf16.mxu0 0
    %313 = vmatpush2.bf16.msra.mxu0 0
    %314 = vmatprep.subr.bf16.mxu0 0
    %315 = vmatpush2.bf16.msra.mxu0 0
    %316 = vmatprep.subr.bf16.mxu0 0
    %317 = vmatpush2.bf16.msra.mxu0 0
    %318 = vmatprep.subr.bf16.mxu0 0
    %319 = vmatpush2.bf16.msra.mxu0 0
    %320 = vmatprep.subr.bf16.mxu0 0
    %321 = vmatpush2.bf16.msra.mxu0 0
    %322 = vmatprep.subr.bf16.mxu0 0
    %323 = vmatpush2.bf16.msra.mxu0 0
    %324 = vmatprep.subr.bf16.mxu0 0
    %325 = vmatpush2.bf16.msra.mxu0 0
    %326 = vmatprep.mubr.bf16.mxu0 0
    %327 = vmatmul.mubr.bf16.gmra.mxu0 %v81
    %v328 = vpop.f32.mrf.mxu0
    %v329 = vadd.f32 0.0, %v328
    %v330 = vpop.f32.mrf.mxu0
    %v331 = vpop.f32.mrf.mxu0
    %v332 = vpop.f32.mrf.mxu0
    %333 = vdwg.mxu0
    %v334 = vadd.f32 %v241, %v329
    %v335 = vadd.f32 %v117, %v334
    %336 = vst [vmem:[#allocation9] sm:$0xff] %v335
    // Predicated region
    $region42: #{tpu_custom_call.1} parent=1 // pred_check
      %p337 = pneg %p66
    $region43: #{tpu_custom_call.1} parent=1 // pred_check_branch
      %339 = sbr.rel (%p337) target = $region45
    $region44: #{tpu_custom_call.1} parent=1 // pred_region
      %v340 = vld [vmem:[#allocation9] sm:$0xff]
      %v341 = vld [vmem:[#allocation2] sm:$0xff]
      %v342 = vrsqrt.pop %v341
      %v343 = vmul.f32 %v341, %v342
      %vm344 = vcmp.eq.f32.partialorder %v341, inf
      %v345 = vsel %vm344, %v341, %v343
      %vm346 = vcmp.eq.f32.partialorder %v341, 0.0
      %v347 = vand.u32 %v341, 2147483648
      %v348 = vsel %vm346, %v347, %v345
      %v349 = vmax.f32 %v348, 1e-15
      %v350 = vtanh.pop %v349
      %v351 = vmul.f32 %v350, %v350
      %v352 = vsub.f32 1.0, %v351
      %v353 = vrcp.pop %v352
      %v354 = vmul.f32 2.0, %v353
      %v355 = vrcp.pop %v349
      %v356 = vmul.f32 %v350, %v355
      %v357 = vmul.f32 %v354, %v356
      %v358 = vld [vmem:[%s3] sm:$0x1]
      %v359 = vld [vmem:[%s4] sm:$0x1]
      %v360 = vld [vmem:[%s5] sm:$0x1]
      %v362 = vlaneseq
      %v363 = vshrl.u32 %v362, 7
      %v364 = vsub.s32 0, %v363
      %v365 = vrot.slane %v358, %v364
      %v367 = vmul.f32 %v340, %v365
      %369 = vset.pattern.permute.xlu0 0
      %370 = vperm.xlu0 %369, %v357
      %v371 = vpop.permute.xlu0 %370
      %v373 = vmul.f32 %v371, %v367
      %v374 = vsub.f32 %v354, 1.0
      %376 = vset.pattern.permute.xlu0 0
      %377 = vperm.xlu0 %376, %v374
      %v378 = vpop.permute.xlu0 %377
      %v381 = vlaneseq
      %v382 = vshrl.u32 %v381, 7
      %v383 = vsub.s32 0, %v382
      %v384 = vrot.slane %v359, %v383
      %v386 = vmul.f32 %v378, %v384
      %v387 = vsub.f32 %v373, %v386
      %v388 = vand.u32 2147483647, %v387
      %vm389 = vcmp.lt.f32.partialorder %v387, 0.0
      %v390 = vsel %vm389, -1.0, 1.0
      %v391 = vmul.f32 %v388, %v388
      %v392 = vadd.f32 %v391, 1.0
      %v393 = vrsqrt.pop %v392
      %v394 = vmul.f32 %v392, %v393
      %vm395 = vcmp.eq.f32.partialorder %v392, inf
      %v396 = vsel %vm395, %v392, %v394
      %vm397 = vcmp.eq.f32.partialorder %v392, 0.0
      %v398 = vand.u32 %v392, 2147483648
      %v399 = vsel %vm397, %v398, %v396
      %v400 = vadd.f32 %v388, %v399
      %v401 = vlog2.pop %v400
      %v402 = vmul.f32 %v401, 0.6931472
      %v403 = vmul.f32 %v390, %v402
      %v405 = vlaneseq
      %v406 = vshrl.u32 %v405, 7
      %v407 = vsub.s32 0, %v406
      %v408 = vrot.slane %v360, %v407
      %v410 = vmul.f32 %v408, %v403
      %v411 = vmul.f32 %v410, 1.442695
      %v412 = vpow.pop %v411
      %v413 = vsub.f32 0.0, %v410
      %v414 = vmul.f32 %v413, 1.442695
      %v415 = vpow.pop %v414
      %v416 = vsub.f32 %v412, %v415
      %v417 = vmul.f32 %v416, 0.5
      %v418 = vmul.f32 %v417, %v417
      %419 = vadd.xlane.f32.xlu0 %v418
      %v420 = vpop.xlane.xlu0 %419
      %421 = vst.msk [vmem:[%s7] sm:$0xff] %vm79, %v420
      %v422 = vadd.f32 %v420, 1.0
      %v423 = vrsqrt.pop %v422
      %v424 = vmul.f32 %v422, %v423
      %vm425 = vcmp.eq.f32.partialorder %v422, inf
      %v426 = vsel %vm425, %v422, %v424
      %vm427 = vcmp.eq.f32.partialorder %v422, 0.0
      %v428 = vand.u32 %v422, 2147483648
      %v429 = vsel %vm427, %v428, %v426
      %v430 = vadd.f32 %v429, 1.0
      %v431 = vrsqrt.pop %v420
      %v432 = vmul.f32 %v420, %v431
      %vm433 = vcmp.eq.f32.partialorder %v420, inf
      %v434 = vsel %vm433, %v420, %v432
      %vm435 = vcmp.eq.f32.partialorder %v420, 0.0
      %v436 = vand.u32 %v420, 2147483648
      %v437 = vsel %vm435, %v436, %v434
      %v438 = vrcp.pop %v430
      %v439 = vmul.f32 %v437, %v438
      %v440 = vmax.f32 %v439, 1e-15
      %v441 = vmin.f32 %v440, 0.9999999
      %v442 = vadd.f32 %v441, 1.0
      %v443 = vsub.f32 1.0, %v441
      %v444 = vrcp.pop %v443
      %v445 = vmul.f32 %v442, %v444
      %v446 = vlog2.pop %v445
      %v447 = vmul.f32 %v446, 0.6931472
      %v448 = vmul.f32 %v447, 0.5
      %v449 = vmul.f32 %v440, %v430
      %v450 = vrcp.pop %v449
      %v451 = vmul.f32 %v448, %v450
      %v452 = vmul.f32 %v417, %v451
      %453 = vst [vmem:[#allocation9] sm:$0xff] %v452
    $region45: #{tpu_custom_call.1} parent=1 // pred_fallthru
      _
    // Predicated region
    $region46: #{tpu_custom_call.1} parent=1 // pred_check
      _
    $region47: #{tpu_custom_call.1} parent=1 // pred_check_branch
      %455 = sbr.rel (0) target = $region49
    $region48: #{tpu_custom_call.1} parent=1 // pred_region
      %s457 = ssub.s32 128, 128
      %458 = vsyncadd [#allocation5], %s457
      %s460 = sshll.u32 [#allocation9], 4
      %s461 = int_to_ptr.vmem [resolvable:$true] %s460
      %463 = dma.vmem_to_hbm [thread:$0]  %s461, 128, %s6, [#allocation5]
    $region49: #{tpu_custom_call.1} parent=1 // pred_fallthru
      _
    // Predicated region
    $region50: #{tpu_custom_call.1} parent=1 // pred_check
      _
    $region51: #{tpu_custom_call.1} parent=1 // pred_check_branch
      %465 = sbr.rel (0) target = $region53
    $region52: #{tpu_custom_call.1} parent=1 // pred_region
      _
    $region53: #{tpu_custom_call.1} parent=1 // pred_fallthru
      _
    // Predicated region
    $region54: #{tpu_custom_call.1} parent=1 // pred_check
      _
    $region55: #{tpu_custom_call.1} parent=1 // pred_check_branch
      %467 = sbr.rel (0) target = $region57
    $region56: #{tpu_custom_call.1} parent=1 // pred_region
      %468 = dma.done [#allocation5], 128
    $region57: #{tpu_custom_call.1} parent=1 // pred_fallthru
      _
    // Predicated region
    $region58: #{tpu_custom_call.1} parent=1 // pred_check
      _
    $region59: #{tpu_custom_call.1} parent=1 // pred_check_branch
      %470 = sbr.rel (0) target = $region61
    $region60: #{tpu_custom_call.1} parent=1 // pred_region
      _
    $region61: #{tpu_custom_call.1} parent=1 // pred_fallthru
      _
    %471 = vsyncpa [#allocation4], 1
    %472 = vsyncpa [#allocation7], 1
    %473 = vsyncpa [#allocation5], 1

</llo_original>
